<compile_context>
chip_gen: v6e
topology: v6e:2x2x1
jax: 0.10.0
libtpu: 0.0.40
codegen_flags: <defaults>
</compile_context>

<pallas_src>
import math

import jax
import jax.numpy as jnp
from jax.experimental import pallas as pl
from jax.experimental.pallas import tpu as pltpu

BN_EPS = 1e-3                       # BatchNorm1d(eps=0.001) in the module
_INV_SQRT2 = 1.0 / math.sqrt(2.0)


def _round_up(n, m):
    return ((n + m - 1) // m) * m


def _choose_tile(length, tile_lanes):
    """Largest multiple of 128 <= tile_lanes that evenly divides the padded L."""
    l128 = _round_up(length, 128)
    best = 128
    t = 128
    cap = min(tile_lanes, l128)
    while t <= cap:
        if l128 % t == 0:
            best = t
        t += 128
    return best, l128


def _make_input_conv_kernel(skip):
    """refs = (x_ref, [sc_ref], w_ref, p_ref, o_ref)

    x_ref : (1, Cin, TILE)   input block, positions on the lane axis
    sc_ref: (1, Cout, TILE)  skip-connection block (only when skip=True)
    w_ref : (Cout, Cin)      1x1 conv weight (grid-resident)
    p_ref : (Cout, 3)        packed [conv_bias, bn_scale, bn_bias] (resident)
    o_ref : (1, Cout, TILE)  output block (lane-dense store)
    """

    def kernel(*refs):
        if skip:
            x_ref, sc_ref, w_ref, p_ref, o_ref = refs
        else:
            x_ref, w_ref, p_ref, o_ref = refs
            sc_ref = None

        x = x_ref[0]                                           # (Cin, TILE) f32
        w = w_ref[...]                                         # (Cout, Cin) f32

        # 1x1 Conv1d == per-position channel matmul on the MXU.
        h = jnp.dot(w, x, preferred_element_type=jnp.float32)  # (Cout, TILE)
        h = h + p_ref[:, 0:1]                                  # conv bias

        # exact GELU (nn.GELU default) -- erf on the EUP.
        h = 0.5 * h * (1.0 + jax.lax.erf(h * _INV_SQRT2))

        # BatchNorm1d (eval mode), folded to a single per-channel FMA.
        h = h * p_ref[:, 1:2] + p_ref[:, 2:3]

        # Dropout: identity in eval mode.
        if skip:
            h = h + sc_ref[0]

        o_ref[0] = h.astype(o_ref.dtype)

    return kernel


def input_conv_forward(x, sc, params, *, skip=False, tile_lanes=1024):
    """x: (B, Cin, L) float32; sc: (B, Cout, L) (used iff skip).

    Returns (B, Cout, L) float32.
    """
    B, c_in, L = x.shape
    w, pvec = params                       # (Cout, Cin), (Cout, 3)
    c_out = w.shape[0]

    tile, l_pad = _choose_tile(L, tile_lanes)
    pad = l_pad - L

    xp = x if pad == 0 else jnp.pad(x, ((0, 0), (0, 0), (0, pad)))

    x_spec = pl.BlockSpec((1, c_in, tile), lambda b, t: (b, 0, t))
    w_spec = pl.BlockSpec((c_out, c_in), lambda b, t: (0, 0))
    p_spec = pl.BlockSpec((c_out, 3), lambda b, t: (0, 0))
    o_spec = pl.BlockSpec((1, c_out, tile), lambda b, t: (b, 0, t))

    inputs = [xp]
    in_specs = [x_spec]
    if skip:
        scp = sc if pad == 0 else jnp.pad(sc, ((0, 0), (0, 0), (0, pad)))
        inputs.append(scp)
        in_specs.append(pl.BlockSpec((1, c_out, tile), lambda b, t: (b, 0, t)))
    inputs += [w, pvec]
    in_specs += [w_spec, p_spec]

    kernel = _make_input_conv_kernel(skip)
    out = pl.pallas_call(
        kernel,
        out_shape=jax.ShapeDtypeStruct((B, c_out, l_pad), jnp.float32),
        grid_spec=pltpu.PrefetchScalarGridSpec(
            num_scalar_prefetch=0,
            grid=(B, l_pad // tile),
            in_specs=in_specs,
            out_specs=o_spec,
        ),
        compiler_params=pltpu.CompilerParams(
            dimension_semantics=("parallel", "parallel")),
    )(*inputs)

    if pad == 0:
        return out
    return out[:, :, :L]


def init_raw_params(key, in_chn, out_chn):
    """PyTorch-style parameters: Conv1d weight/bias + BatchNorm1d params."""
    k1, k2, k3, k4, k5, k6 = jax.random.split(key, 6)
    w = jax.random.normal(k1, (out_chn, in_chn, 1), jnp.float32) / math.sqrt(in_chn)
    b = 0.1 * jax.random.normal(k2, (out_chn,), jnp.float32)
    gamma = 1.0 + 0.1 * jax.random.normal(k3, (out_chn,), jnp.float32)
    beta = 0.1 * jax.random.normal(k4, (out_chn,), jnp.float32)
    r_mean = 0.1 * jax.random.normal(k5, (out_chn,), jnp.float32)
    r_var = 1.0 + 0.1 * jax.random.uniform(k6, (out_chn,), jnp.float32)
    return (w, b, gamma, beta, r_mean, r_var)


def fold_params(raw):
    """Fold BN running stats; pack conv_bias/bn_scale/bn_bias into (Cout, 3)."""
    w, b, gamma, beta, r_mean, r_var = raw
    bn_scale = gamma / jnp.sqrt(r_var + BN_EPS)
    bn_bias = beta - r_mean * bn_scale
    pvec = jnp.stack([b, bn_scale, bn_bias], axis=1).astype(jnp.float32)
    return (w[:, :, 0].astype(jnp.float32), pvec)        # (Cout, Cin), (Cout, 3)


def input_conv_reference(x, sc, raw, skip=False):
    """Plain-JAX reference matching the PyTorch forward in eval mode."""
    w, b, gamma, beta, r_mean, r_var = raw
    h = jnp.einsum('oc,bcl->bol', w[:, :, 0], x) + b[None, :, None]
    h = 0.5 * h * (1.0 + jax.lax.erf(h * _INV_SQRT2))
    h = ((h - r_mean[None, :, None])
         / jnp.sqrt(r_var + BN_EPS)[None, :, None]
         * gamma[None, :, None] + beta[None, :, None])
    # Dropout: identity in eval mode.
    if skip:
        h = sc + h
    return h


if __name__ == "__main__":
    B, in_chn, out_chn, L = 2, 4, 32, 16

    key = jax.random.PRNGKey(0)
    kx, ks, kp = jax.random.split(key, 3)
    x = jax.random.normal(kx, (B, in_chn, L), jnp.float32)
    sc = jax.random.normal(ks, (B, out_chn, L), jnp.float32)

    raw = init_raw_params(kp, in_chn, out_chn)
    params = fold_params(raw)

    fwd_skip = jax.jit(lambda xx, ss: input_conv_forward(xx, ss, params, skip=True))
    fwd_noskip = jax.jit(lambda xx: input_conv_forward(xx, None, params, skip=False))

    y1 = jax.block_until_ready(fwd_skip(x, sc))
    y0 = jax.block_until_ready(fwd_noskip(x))

    y1_ref = input_conv_reference(x, sc, raw, skip=True)
    y0_ref = input_conv_reference(x, None, raw, skip=False)

    assert y1.shape == (B, out_chn, L) and y0.shape == (B, out_chn, L)
    assert jnp.allclose(y1, y1_ref, rtol=1e-4, atol=1e-4), float(
        jnp.max(jnp.abs(y1 - y1_ref)))
    assert jnp.allclose(y0, y0_ref, rtol=1e-4, atol=1e-4), float(
        jnp.max(jnp.abs(y0 - y0_ref)))

    print("KERNEL_OK")
</pallas_src>

<mosaic_0001>
module attributes {stable_mosaic.version = 11 : i64} {
  func.func @kernel(%arg0: i32, %arg1: i32, %arg2: memref<1x4x128xf32, #tpu.memory_space<vmem>>, %arg3: memref<1x32x128xf32, #tpu.memory_space<vmem>>, %arg4: memref<32x4xf32, #tpu.memory_space<vmem>>, %arg5: memref<32x3xf32, #tpu.memory_space<vmem>>, %arg6: memref<1x32x128xf32, #tpu.memory_space<vmem>>) attributes {dimension_semantics = [#tpu.dimension_semantics<parallel>, #tpu.dimension_semantics<parallel>], iteration_bounds = array<i64: 2, 1>, scalar_prefetch = 0 : i64, scratch_operands = 0 : i64, tpu.core_type = #tpu.core_type<tc>, window_params = [{transform_indices = @transform_0, window_bounds = array<i64: 1, 4, 128>}, {transform_indices = @transform_1, window_bounds = array<i64: 1, 32, 128>}, {pipeline_mode = #tpu.pipeline_mode<synchronous>, transform_indices = @transform_2, window_bounds = array<i64: 32, 4>}, {pipeline_mode = #tpu.pipeline_mode<synchronous>, transform_indices = @transform_3, window_bounds = array<i64: 32, 3>}, {transform_indices = @transform_4, window_bounds = array<i64: 1, 32, 128>}]} {
    %c0 = arith.constant 0 : index
    %c0_0 = arith.constant 0 : index
    %c0_1 = arith.constant 0 : index
    %0 = vector.load %arg2[%c0, %c0_0, %c0_1] : memref<1x4x128xf32, #tpu.memory_space<vmem>>, vector<1x4x128xf32>
    %1 = vector.shape_cast %0 : vector<1x4x128xf32> to vector<4x128xf32>
    %c0_2 = arith.constant 0 : index
    %c0_3 = arith.constant 0 : index
    %2 = vector.load %arg4[%c0_2, %c0_3] : memref<32x4xf32, #tpu.memory_space<vmem>>, vector<32x4xf32>
    %cst = arith.constant dense<0.000000e+00> : vector<32x128xf32>
    %3 = tpu.matmul %2, %1, %cst {dimension_numbers = #tpu.dot_dimension_numbers<[1], [0], [0], [1], [0, 0, 1, 1], [], []>} : vector<32x4xf32>, vector<4x128xf32>, vector<32x128xf32> -> vector<32x128xf32>
    %c0_4 = arith.constant 0 : index
    %c0_5 = arith.constant 0 : index
    %4 = vector.load %arg5[%c0_4, %c0_5] : memref<32x3xf32, #tpu.memory_space<vmem>>, vector<32x1xf32>
    %5 = vector.broadcast %4 : vector<32x1xf32> to vector<32x128xf32>
    %6 = arith.addf %3, %5 : vector<32x128xf32>
    %cst_6 = arith.constant 5.000000e-01 : f32
    %7 = vector.broadcast %cst_6 : f32 to vector<32x128xf32>
    %8 = arith.mulf %7, %6 : vector<32x128xf32>
    %cst_7 = arith.constant 0.707106769 : f32
    %9 = vector.broadcast %cst_7 : f32 to vector<32x128xf32>
    %10 = arith.mulf %6, %9 : vector<32x128xf32>
    %11 = math.erf %10 : vector<32x128xf32>
    %cst_8 = arith.constant 1.000000e+00 : f32
    %12 = vector.broadcast %cst_8 : f32 to vector<32x128xf32>
    %13 = arith.addf %12, %11 : vector<32x128xf32>
    %14 = arith.mulf %8, %13 : vector<32x128xf32>
    %c0_9 = arith.constant 0 : index
    %c1 = arith.constant 1 : index
    %15 = vector.load %arg5[%c0_9, %c1] : memref<32x3xf32, #tpu.memory_space<vmem>>, vector<32x1xf32>
    %16 = vector.broadcast %15 : vector<32x1xf32> to vector<32x128xf32>
    %17 = arith.mulf %14, %16 : vector<32x128xf32>
    %c0_10 = arith.constant 0 : index
    %c2 = arith.constant 2 : index
    %18 = vector.load %arg5[%c0_10, %c2] : memref<32x3xf32, #tpu.memory_space<vmem>>, vector<32x1xf32>
    %19 = vector.broadcast %18 : vector<32x1xf32> to vector<32x128xf32>
    %20 = arith.addf %17, %19 : vector<32x128xf32>
    %c0_11 = arith.constant 0 : index
    %c0_12 = arith.constant 0 : index
    %c0_13 = arith.constant 0 : index
    %21 = vector.load %arg3[%c0_11, %c0_12, %c0_13] : memref<1x32x128xf32, #tpu.memory_space<vmem>>, vector<1x32x128xf32>
    %22 = vector.shape_cast %21 : vector<1x32x128xf32> to vector<32x128xf32>
    %23 = arith.addf %20, %22 : vector<32x128xf32>
    %c0_14 = arith.constant 0 : index
    %c0_15 = arith.constant 0 : index
    %c0_16 = arith.constant 0 : index
    %24 = vector.load %arg6[%c0_14, %c0_15, %c0_16] : memref<1x32x128xf32, #tpu.memory_space<vmem>>, vector<1x32x128xf32>
    %25 = vector.shape_cast %24 : vector<1x32x128xf32> to vector<32x128xf32>
    %26 = vector.shape_cast %23 : vector<32x128xf32> to vector<1x32x128xf32>
    tpu.vector_store %arg6[%c0_14, %c0_15, %c0_16], %26 {strides = array<i32>} : memref<1x32x128xf32, #tpu.memory_space<vmem>>, vector<1x32x128xf32>,
    return
  }
  func.func @transform_0(%arg0: i32, %arg1: i32) -> (i32, i32, i32) {
    %c0_i32 = arith.constant 0 : i32
    %c0_i32_0 = arith.constant 0 : i32
    return %arg0, %c0_i32, %arg1 : i32, i32, i32
  }
  func.func @transform_1(%arg0: i32, %arg1: i32) -> (i32, i32, i32) {
    %c0_i32 = arith.constant 0 : i32
    %c0_i32_0 = arith.constant 0 : i32
    return %arg0, %c0_i32, %arg1 : i32, i32, i32
  }
  func.func @transform_2(%arg0: i32, %arg1: i32) -> (i32, i32) {
    %c0_i32 = arith.constant 0 : i32
    %c0_i32_0 = arith.constant 0 : i32
    %c0_i32_1 = arith.constant 0 : i32
    return %c0_i32, %c0_i32_0 : i32, i32
  }
  func.func @transform_3(%arg0: i32, %arg1: i32) -> (i32, i32) {
    %c0_i32 = arith.constant 0 : i32
    %c0_i32_0 = arith.constant 0 : i32
    %c0_i32_1 = arith.constant 0 : i32
    return %c0_i32, %c0_i32_0 : i32, i32
  }
  func.func @transform_4(%arg0: i32, %arg1: i32) -> (i32, i32, i32) {
    %c0_i32 = arith.constant 0 : i32
    %c0_i32_0 = arith.constant 0 : i32
    return %arg0, %c0_i32, %arg1 : i32, i32, i32
  }
}

</mosaic_0001>

<llo_original>
// kernel: _lambda_.1
$region0: #{_lambda_.1}
  #allocation0 [shape = 'u32[]', space=smem, size = 0x4, offset = 0x4, fixed_abs, tag = 'smem constant byte address 0x4 - core index']
  #allocation1 [shape = 'u32[144,128]{1,0:T(1,128)}', space=vmem, size = 0x12000, scoped, tag = 'internal scratch']
  %s0 = inlined_call_operand.vmem [shape: f32[2,4,128], index: 0, kind: input, shape index: {}]
  %s1 = inlined_call_operand.vmem [shape: f32[2,32,128], index: 1, kind: input, shape index: {}]
  %s2 = inlined_call_operand.vmem [shape: f32[32,4], index: 2, kind: input, shape index: {}]
  %s3 = inlined_call_operand.vmem [shape: f32[32,3], index: 3, kind: input, shape index: {}]
  %s4 = inlined_call_operand.vmem [shape: f32[2,32,128], index: 4, kind: output, shape index: {}]
  %s5 = sld [smem:[#allocation0]]
  $region49: #{_lambda_.1} parent=0
    _
  %s7 = ssub.s32 1, %s5
  %s8 = scalar_select 0, %s7, %s5
  loop: start=0, step=1, limit=4
  $region2: #{_lambda_.1} parent=0 // loop_pre_header
    _
  $region3: #{_lambda_.1} parent=0 // loop_header
    %s10 = sphi 0, %s14
    %p11 = scmp.ge.s32.totalorder %s10, 4
    %s17 = sphi 0, %s29
    %s18 = sphi 0, %s25
    %s19 = sphi 0, %s17
    %s20 = sphi 0, %s18
    %s21 = sphi 0, %s19
    %s22 = sphi 0, %s20
    %s34 = sphi 0, %s36
    %s37 = sphi 0, %s34
    %s38 = sphi 0, %s37
    %s54 = sphi 0, %s38
    %s62 = sphi 0, %s64
    %s65 = sphi 0, %s62
    %s66 = sphi 0, %s65
    %s82 = sphi 0, %s66
    %s86 = sphi 0, %s86
    %s88 = sphi 0, %s86
    %s89 = sphi 0, %s88
    %s103 = sphi 0, %s89
    %s107 = sphi 0, %s107
    %s109 = sphi 0, %s107
    %s110 = sphi 0, %s109
    %s124 = sphi 0, %s110
    %s132 = sphi 0, %s134
    %s135 = sphi 0, %s132
    %s136 = sphi 0, %s135
    %s152 = sphi 0, %s136
  $region4: #{_lambda_.1} parent=0 // loop_header_branch
    %13 = sbr.rel (%p11) target = $region8
  $region5: #{_lambda_.1} parent=0 // loop_body
    %s15 = ssub.s32 %s10, 1
    %s16 = ssub.s32 %s10, 2
    %s23 = sadd.s32 1, %s18
    %p24 = scmp.ge.s32.totalorder %s23, 1
    %s25 = scalar_select %p24, 0, %s23
    %s26 = sadd.s32 1, %s17
    %s27 = scalar_select %p24, %s26, %s17
    %p28 = scmp.ge.s32.totalorder %s27, 2
    %s29 = scalar_select %p28, 0, %s27
    %s30 = ssub.s32 %s17, %s29
    %s31 = ssub.s32 %s18, %s25
    %s32 = sor.u32 %s30, %s31
    %p33 = scmp.eq.s32.totalorder %s32, 0
    %s35 = sadd.s32 %s34, 1
    %s36 = scalar_select %p33, %s34, %s35
    %p39 = pneg %p33
    %p40 = scmp.eq.s32.totalorder %s10, 1
    %p41 = por %p39, %p40
    %p42 = scmp.ne.s32.totalorder %s34, %s37
    %p43 = scmp.eq.s32.totalorder %s10, 0
    %p44 = por %p42, %p43
    %p45 = scmp.ne.s32.totalorder %s34, %s37
    %p46 = scmp.eq.s32.totalorder %s15, 1
    %p47 = por %p45, %p46
    %p48 = scmp.ne.s32.totalorder %s37, %s38
    %p49 = scmp.eq.s32.totalorder %s15, 0
    %p50 = por %p48, %p49
    %p51 = scmp.ne.s32.totalorder %s37, %s38
    %p52 = scmp.eq.s32.totalorder %s16, 1
    %p53 = por %p51, %p52
    %p55 = scmp.ne.s32.totalorder %s38, %s54
    %p56 = scmp.eq.s32.totalorder %s16, 0
    %p57 = por %p55, %p56
    %s58 = ssub.s32 %s17, %s29
    %s59 = ssub.s32 %s18, %s25
    %s60 = sor.u32 %s58, %s59
    %p61 = scmp.eq.s32.totalorder %s60, 0
    %s63 = sadd.s32 %s62, 1
    %s64 = scalar_select %p61, %s62, %s63
    %p67 = pneg %p61
    %p68 = scmp.eq.s32.totalorder %s10, 1
    %p69 = por %p67, %p68
    %p70 = scmp.ne.s32.totalorder %s62, %s65
    %p71 = scmp.eq.s32.totalorder %s10, 0
    %p72 = por %p70, %p71
    %p73 = scmp.ne.s32.totalorder %s62, %s65
    %p74 = scmp.eq.s32.totalorder %s15, 1
    %p75 = por %p73, %p74
    %p76 = scmp.ne.s32.totalorder %s65, %s66
    %p77 = scmp.eq.s32.totalorder %s15, 0
    %p78 = por %p76, %p77
    %p79 = scmp.ne.s32.totalorder %s65, %s66
    %p80 = scmp.eq.s32.totalorder %s16, 1
    %p81 = por %p79, %p80
    %p83 = scmp.ne.s32.totalorder %s66, %s82
    %p84 = scmp.eq.s32.totalorder %s16, 0
    %p85 = por %p83, %p84
    %s87 = sadd.s32 %s86, 1
    %p90 = scmp.eq.s32.totalorder %s10, 1
    %p91 = scmp.ne.s32.totalorder %s86, %s88
    %p92 = scmp.eq.s32.totalorder %s10, 0
    %p93 = por %p91, %p92
    %p94 = scmp.ne.s32.totalorder %s86, %s88
    %p95 = scmp.eq.s32.totalorder %s15, 1
    %p96 = por %p94, %p95
    %p97 = scmp.ne.s32.totalorder %s88, %s89
    %p98 = scmp.eq.s32.totalorder %s15, 0
    %p99 = por %p97, %p98
    %p100 = scmp.ne.s32.totalorder %s88, %s89
    %p101 = scmp.eq.s32.totalorder %s16, 1
    %p102 = por %p100, %p101
    %p104 = scmp.ne.s32.totalorder %s89, %s103
    %p105 = scmp.eq.s32.totalorder %s16, 0
    %p106 = por %p104, %p105
    %s108 = sadd.s32 %s107, 1
    %p111 = scmp.eq.s32.totalorder %s10, 1
    %p112 = scmp.ne.s32.totalorder %s107, %s109
    %p113 = scmp.eq.s32.totalorder %s10, 0
    %p114 = por %p112, %p113
    %p115 = scmp.ne.s32.totalorder %s107, %s109
    %p116 = scmp.eq.s32.totalorder %s15, 1
    %p117 = por %p115, %p116
    %p118 = scmp.ne.s32.totalorder %s109, %s110
    %p119 = scmp.eq.s32.totalorder %s15, 0
    %p120 = por %p118, %p119
    %p121 = scmp.ne.s32.totalorder %s109, %s110
    %p122 = scmp.eq.s32.totalorder %s16, 1
    %p123 = por %p121, %p122
    %p125 = scmp.ne.s32.totalorder %s110, %s124
    %p126 = scmp.eq.s32.totalorder %s16, 0
    %p127 = por %p125, %p126
    %s128 = ssub.s32 %s17, %s29
    %s129 = ssub.s32 %s18, %s25
    %s130 = sor.u32 %s128, %s129
    %p131 = scmp.eq.s32.totalorder %s130, 0
    %s133 = sadd.s32 %s132, 1
    %s134 = scalar_select %p131, %s132, %s133
    %p137 = pneg %p131
    %p138 = scmp.eq.s32.totalorder %s10, 1
    %p139 = por %p137, %p138
    %p140 = scmp.ne.s32.totalorder %s132, %s135
    %p141 = scmp.eq.s32.totalorder %s10, 0
    %p142 = por %p140, %p141
    %p143 = scmp.ne.s32.totalorder %s132, %s135
    %p144 = scmp.eq.s32.totalorder %s15, 1
    %p145 = por %p143, %p144
    %p146 = scmp.ne.s32.totalorder %s135, %s136
    %p147 = scmp.eq.s32.totalorder %s15, 0
    %p148 = por %p146, %p147
    %p149 = scmp.ne.s32.totalorder %s135, %s136
    %p150 = scmp.eq.s32.totalorder %s16, 1
    %p151 = por %p149, %p150
    %p153 = scmp.ne.s32.totalorder %s136, %s152
    %p154 = scmp.eq.s32.totalorder %s16, 0
    %p155 = por %p153, %p154
    %p156 = scmp.le.s32.totalorder 1, %s10
    %p157 = scmp.lt.s32.totalorder %s10, 3
    %p158 = pnand %p156, %p157
    %p159 = pneg %p158
    // Predicated region
    $region9: #{_lambda_.1} parent=5 // pred_check
      _
    $region10: #{_lambda_.1} parent=5 // pred_check_branch
      %161 = sbr.rel (%p158) target = $region12
    $region11: #{_lambda_.1} parent=5 // pred_region
      %s162 = ssub.s32 %s10, 1
      // Predicated region
      $region13: #{_lambda_.1} parent=11 // pred_check
        %p163 = pneg %p99
      $region14: #{_lambda_.1} parent=11 // pred_check_branch
        %165 = sbr.rel (%p163) target = $region16
      $region15: #{_lambda_.1} parent=11 // pred_region
        _
      $region16: #{_lambda_.1} parent=11 // pred_fallthru
        _
      // Predicated region
      $region17: #{_lambda_.1} parent=11 // pred_check
        %p166 = pneg %p120
      $region18: #{_lambda_.1} parent=11 // pred_check_branch
        %168 = sbr.rel (%p166) target = $region20
      $region19: #{_lambda_.1} parent=11 // pred_region
        _
      $region20: #{_lambda_.1} parent=11 // pred_fallthru
        _
    $region12: #{_lambda_.1} parent=5 // pred_fallthru
      _
    %p169 = scmp.lt.s32.totalorder %s10, 2
    // Predicated region
    $region21: #{_lambda_.1} parent=5 // pred_check
      %p170 = pneg %p169
    $region22: #{_lambda_.1} parent=5 // pred_check_branch
      %172 = sbr.rel (%p170) target = $region24
    $region23: #{_lambda_.1} parent=5 // pred_region
      // Predicated region
      $region25: #{_lambda_.1} parent=23 // pred_check
        %p173 = pneg %p44
      $region26: #{_lambda_.1} parent=23 // pred_check_branch
        %175 = sbr.rel (%p173) target = $region28
      $region27: #{_lambda_.1} parent=23 // pred_region
        %p176 = scmp.lt.s32.totalorder %s17, 1
        %s177 = scalar_select %p176, %s17, 1
        %p178 = scmp.lt.s32.totalorder %s18, 0
        %s179 = scalar_select %p178, %s18, 0
        %s180 = sadd.s32 %s179, %s177
        %s181 = smul.addr %s180, 4
        %s182 = scalar_lea.vmem %s0, %s181
      $region28: #{_lambda_.1} parent=23 // pred_fallthru
        _
      // Predicated region
      $region29: #{_lambda_.1} parent=23 // pred_check
        %p183 = pneg %p72
      $region30: #{_lambda_.1} parent=23 // pred_check_branch
        %185 = sbr.rel (%p183) target = $region32
      $region31: #{_lambda_.1} parent=23 // pred_region
        %p186 = scmp.lt.s32.totalorder %s17, 1
        %s187 = scalar_select %p186, %s17, 1
        %p188 = scmp.lt.s32.totalorder %s18, 0
        %s189 = scalar_select %p188, %s18, 0
        %s190 = smul.addr %s187, 4
        %s191 = sadd.s32 %s189, %s190
        %s192 = smul.addr %s191, 8
        %s193 = scalar_lea.vmem %s1, %s192
      $region32: #{_lambda_.1} parent=23 // pred_fallthru
        _
    $region24: #{_lambda_.1} parent=5 // pred_fallthru
      _
    %p194 = scmp.le.s32.totalorder 1, %s10
    %p195 = scmp.lt.s32.totalorder %s10, 3
    %p196 = pnand %p194, %p195
    %p197 = pneg %p196
    // Predicated region
    $region33: #{_lambda_.1} parent=5 // pred_check
      _
    $region34: #{_lambda_.1} parent=5 // pred_check_branch
      %199 = sbr.rel (%p196) target = $region36
    $region35: #{_lambda_.1} parent=5 // pred_region
      %s200 = ssub.s32 %s10, 1
      %p201 = scmp.lt.s32.totalorder %s19, 1
      %s202 = scalar_select %p201, %s19, 1
      %p203 = scmp.lt.s32.totalorder %s20, 0
      %s204 = scalar_select %p203, %s20, 0
      %s205 = sadd.s32 %s204, %s202
      %s206 = smul.addr %s205, 4
      %s207 = scalar_lea.vmem %s0, %s206
      %p208 = pneg %p50
      %p209 = pneg %p47
      %p210 = scmp.lt.s32.totalorder %s19, 1
      %s211 = scalar_select %p210, %s19, 1
      %p212 = scmp.lt.s32.totalorder %s20, 0
      %s213 = scalar_select %p212, %s20, 0
      %s214 = smul.addr %s211, 4
      %s215 = sadd.s32 %s213, %s214
      %s216 = smul.addr %s215, 8
      %s217 = scalar_lea.vmem %s1, %s216
      %p218 = pneg %p78
      %p219 = pneg %p75
      %p220 = pneg %p99
      %p221 = pneg %p96
      %p222 = pneg %p120
      %p223 = pneg %p117
      %p224 = pneg %p148
      %p225 = pneg %p145
      %p226 = scmp.lt.s32.totalorder %s19, 1
      %s227 = scalar_select %p226, %s19, 1
      %p228 = scmp.lt.s32.totalorder %s20, 0
      %s229 = scalar_select %p228, %s20, 0
      %s230 = smul.addr %s227, 4
      %s231 = sadd.s32 %s229, %s230
      %s232 = smul.addr %s231, 8
      %s233 = scalar_lea.vmem %s4, %s232
      %p234 = scmp.lt.s32.totalorder %s19, 1
      %s235 = scalar_select %p234, %s19, 1
      %p236 = scmp.lt.s32.totalorder %s20, 0
      %s237 = scalar_select %p236, %s20, 0
      %s238 = sadd.s32 %s237, %s235
      %s239 = smul.addr %s238, 4
      %s240 = scalar_lea.vmem %s0, %s239
      %p241 = scmp.lt.s32.totalorder %s19, 1
      %s242 = scalar_select %p241, %s19, 1
      %p243 = scmp.lt.s32.totalorder %s20, 0
      %s244 = scalar_select %p243, %s20, 0
      %s245 = smul.addr %s242, 4
      %s246 = sadd.s32 %s244, %s245
      %s247 = smul.addr %s246, 8
      %s248 = scalar_lea.vmem %s1, %s247
      %p249 = scmp.lt.s32.totalorder %s19, 1
      %s250 = scalar_select %p249, %s19, 1
      %p251 = scmp.lt.s32.totalorder %s20, 0
      %s252 = scalar_select %p251, %s20, 0
      %s253 = smul.addr %s250, 4
      %s254 = sadd.s32 %s252, %s253
      %s255 = smul.addr %s254, 8
      %s256 = scalar_lea.vmem %s4, %s255
      %v257 = vld [vmem:[%s240] sm:$0xf]
      %v258 = vld [vmem:[%s2] sm:$0xff]
      %v259 = vld [vmem:[%s2 + $0x8] sm:$0xff]
      %v260 = vld [vmem:[%s2 + $0x10] sm:$0xff]
      %v261 = vld [vmem:[%s2 + $0x18] sm:$0xff]
      %v262 = vld [vmem:[%s3] sm:$0xff]
      %v263 = vld [vmem:[%s3 + $0x8] sm:$0xff]
      %v264 = vld [vmem:[%s3 + $0x10] sm:$0xff]
      %v265 = vld [vmem:[%s3 + $0x18] sm:$0xff]
      %267 = vset.pattern.permute.xlu0 0
      %268 = vperm.xlu0 %267, %v262
      %v269 = vpop.permute.xlu0 %268
      %272 = vset.pattern.permute.xlu0 0
      %273 = vperm.xlu0 %272, %v263
      %v274 = vpop.permute.xlu0 %273
      %277 = vset.pattern.permute.xlu0 0
      %278 = vperm.xlu0 %277, %v264
      %v279 = vpop.permute.xlu0 %278
      %282 = vset.pattern.permute.xlu0 0
      %283 = vperm.xlu0 %282, %v265
      %v284 = vpop.permute.xlu0 %283
      %vm286 = vcmask 31744
      %v288 = vsel %vm286, %v258, 0
      %v291 = vsel %vm286, %v259, 0
      %v294 = vsel %vm286, %v260, 0
      %v297 = vsel %vm286, %v261, 0
      %vm299 = vcmask 1043456
      %v301 = vsel %vm299, %v257, 0
      %303 = vmatprep.subr.mxu0 0.0
      %304 = vmatpush1.msra.mxu0 0.0
      %305 = vmatprep.subr.mxu0 0.0
      %306 = vmatpush1.msra.mxu0 0.0
      %307 = vmatprep.subr.mxu0 0.0
      %308 = vmatpush1.msra.mxu0 0.0
      %309 = vmatprep.subr.mxu0 0.0
      %310 = vmatpush1.msra.mxu0 0.0
      %311 = vmatprep.subr.mxu0 0.0
      %312 = vmatpush1.msra.mxu0 0.0
      %313 = vmatprep.subr.mxu0 0.0
      %314 = vmatpush1.msra.mxu0 0.0
      %315 = vmatprep.subr.mxu0 0.0
      %316 = vmatpush1.msra.mxu0 0.0
      %317 = vmatprep.subr.mxu0 0.0
      %318 = vmatpush1.msra.mxu0 0.0
      %319 = vmatprep.subr.mxu0 0.0
      %320 = vmatpush1.msra.mxu0 0.0
      %321 = vmatprep.subr.mxu0 0.0
      %322 = vmatpush1.msra.mxu0 0.0
      %323 = vmatprep.subr.mxu0 0.0
      %324 = vmatpush1.msra.mxu0 0.0
      %325 = vmatprep.subr.mxu0 0.0
      %326 = vmatpush1.msra.mxu0 0.0
      %327 = vmatprep.subr.mxu0 0.0
      %328 = vmatpush1.msra.mxu0 0.0
      %329 = vmatprep.subr.mxu0 0.0
      %330 = vmatpush1.msra.mxu0 0.0
      %331 = vmatprep.subr.mxu0 0.0
      %332 = vmatpush1.msra.mxu0 0.0
      %333 = vmatprep.subr.mxu0 0.0
      %334 = vmatpush1.msra.mxu0 %v301
      %335 = vmatprep.subr.mxu0 0.0
      %336 = vmatpush2.msra.mxu0 0.0
      %337 = vmatprep.subr.mxu0 0.0
      %338 = vmatpush2.msra.mxu0 0.0
      %339 = vmatprep.subr.mxu0 0.0
      %340 = vmatpush2.msra.mxu0 0.0
      %341 = vmatprep.subr.mxu0 0.0
      %342 = vmatpush2.msra.mxu0 0.0
      %343 = vmatprep.subr.mxu0 0.0
      %344 = vmatpush2.msra.mxu0 0.0
      %345 = vmatprep.subr.mxu0 0.0
      %346 = vmatpush2.msra.mxu0 0.0
      %347 = vmatprep.subr.mxu0 0.0
      %348 = vmatpush2.msra.mxu0 0.0
      %349 = vmatprep.subr.mxu0 0.0
      %350 = vmatpush2.msra.mxu0 0.0
      %351 = vmatprep.subr.mxu0 0.0
      %352 = vmatpush2.msra.mxu0 0.0
      %353 = vmatprep.subr.mxu0 0.0
      %354 = vmatpush2.msra.mxu0 0.0
      %355 = vmatprep.subr.mxu0 0.0
      %356 = vmatpush2.msra.mxu0 0.0
      %357 = vmatprep.subr.mxu0 0.0
      %358 = vmatpush2.msra.mxu0 0.0
      %359 = vmatprep.subr.mxu0 0.0
      %360 = vmatpush2.msra.mxu0 0.0
      %361 = vmatprep.subr.mxu0 0.0
      %362 = vmatpush2.msra.mxu0 0.0
      %363 = vmatprep.subr.mxu0 0.0
      %364 = vmatpush2.msra.mxu0 0.0
      %365 = vmatprep.subr.mxu0 0.0
      %366 = vmatpush2.msra.mxu0 0.0
      %367 = vmatprep.mubr.f32.mxu0 0.0
      %368 = vmatmul.mubr.f32.gmra.mxu0 %v288
      %v369 = vpop.f32.mrf.mxu0
      %v370 = vadd.f32 %v269, %v369
      %v371 = vpop.f32.mrf.mxu0
      %372 = vmatprep.mubr.f32.mxu0 0.0
      %373 = vmatmul.mubr.f32.gmra.mxu0 %v291
      %v374 = vpop.f32.mrf.mxu0
      %v375 = vadd.f32 %v274, %v374
      %v376 = vpop.f32.mrf.mxu0
      %377 = vmatprep.mubr.f32.mxu0 0.0
      %378 = vmatmul.mubr.f32.gmra.mxu0 %v294
      %v379 = vpop.f32.mrf.mxu0
      %v380 = vadd.f32 %v279, %v379
      %v381 = vpop.f32.mrf.mxu0
      %382 = vmatprep.mubr.f32.mxu0 0.0
      %383 = vmatmul.mubr.f32.gmra.mxu0 %v297
      %v384 = vpop.f32.mrf.mxu0
      %v385 = vadd.f32 %v284, %v384
      %v386 = vpop.f32.mrf.mxu0
      %387 = vdwg.mxu0
      %v388 = vmul.f32 %v370, 0.5
      %v389 = vmul.f32 %v375, 0.5
      %v390 = vmul.f32 %v380, 0.5
      %v391 = vmul.f32 %v385, 0.5
      %v392 = vmul.f32 %v370, 0.70710677
      %v393 = vmul.f32 %v375, 0.70710677
      %v394 = vmul.f32 %v380, 0.70710677
      %v395 = vmul.f32 %v385, 0.70710677
      %v396 = verf.f32.pop %v392
      %v397 = verf.f32.pop %v393
      %v398 = verf.f32.pop %v394
      %v399 = verf.f32.pop %v395
      %v400 = vadd.f32 %v396, 1.0
      %v401 = vadd.f32 %v397, 1.0
      %v402 = vadd.f32 %v398, 1.0
      %v403 = vadd.f32 %v399, 1.0
      %v404 = vmul.f32 %v388, %v400
      %v405 = vmul.f32 %v389, %v401
      %v406 = vmul.f32 %v390, %v402
      %v407 = vmul.f32 %v391, %v403
      %408 = vset.pattern.permute.xlu0 1
      %409 = vperm.xlu0 %408, %v262
      %v410 = vpop.permute.xlu0 %409
      %412 = vset.pattern.permute.xlu0 1
      %413 = vperm.xlu0 %412, %v263
      %v414 = vpop.permute.xlu0 %413
      %416 = vset.pattern.permute.xlu0 1
      %417 = vperm.xlu0 %416, %v264
      %v418 = vpop.permute.xlu0 %417
      %420 = vset.pattern.permute.xlu0 1
      %421 = vperm.xlu0 %420, %v265
      %v422 = vpop.permute.xlu0 %421
      %v424 = vmul.f32 %v404, %v410
      %v425 = vmul.f32 %v405, %v414
      %v426 = vmul.f32 %v406, %v418
      %v427 = vmul.f32 %v407, %v422
      %428 = vset.pattern.permute.xlu0 2
      %429 = vperm.xlu0 %428, %v262
      %v430 = vpop.permute.xlu0 %429
      %432 = vset.pattern.permute.xlu0 2
      %433 = vperm.xlu0 %432, %v263
      %v434 = vpop.permute.xlu0 %433
      %436 = vset.pattern.permute.xlu0 2
      %437 = vperm.xlu0 %436, %v264
      %v438 = vpop.permute.xlu0 %437
      %440 = vset.pattern.permute.xlu0 2
      %441 = vperm.xlu0 %440, %v265
      %v442 = vpop.permute.xlu0 %441
      %v444 = vadd.f32 %v424, %v430
      %v445 = vadd.f32 %v425, %v434
      %v446 = vadd.f32 %v426, %v438
      %v447 = vadd.f32 %v427, %v442
      %v448 = vld [vmem:[%s248] sm:$0xff]
      %v449 = vld [vmem:[%s248 + $0x8] sm:$0xff]
      %v450 = vld [vmem:[%s248 + $0x10] sm:$0xff]
      %v451 = vld [vmem:[%s248 + $0x18] sm:$0xff]
      %v452 = vadd.f32 %v444, %v448
      %v453 = vadd.f32 %v445, %v449
      %v454 = vadd.f32 %v446, %v450
      %v455 = vadd.f32 %v447, %v451
      %456 = vst [vmem:[%s256] sm:$0xff] %v452
      %457 = vst [vmem:[%s256 + $0x8] sm:$0xff] %v453
      %458 = vst [vmem:[%s256 + $0x10] sm:$0xff] %v454
      %459 = vst [vmem:[%s256 + $0x18] sm:$0xff] %v455
      %p460 = scmp.lt.s32.totalorder %s19, 1
      %s461 = scalar_select %p460, %s19, 1
      %p462 = scmp.lt.s32.totalorder %s20, 0
      %s463 = scalar_select %p462, %s20, 0
      %s464 = smul.addr %s461, 4
      %s465 = sadd.s32 %s463, %s464
      %s466 = smul.addr %s465, 8
      %s467 = scalar_lea.vmem %s4, %s466
      // Predicated region
      $region37: #{_lambda_.1} parent=35 // pred_check
        %p468 = pneg %p145
      $region38: #{_lambda_.1} parent=35 // pred_check_branch
        %470 = sbr.rel (%p468) target = $region40
      $region39: #{_lambda_.1} parent=35 // pred_region
        _
      $region40: #{_lambda_.1} parent=35 // pred_fallthru
        _
    $region36: #{_lambda_.1} parent=5 // pred_fallthru
      _
    %p471 = scmp.le.s32.totalorder 2, %s10
    // Predicated region
    $region41: #{_lambda_.1} parent=5 // pred_check
      %p472 = pneg %p471
    $region42: #{_lambda_.1} parent=5 // pred_check_branch
      %474 = sbr.rel (%p472) target = $region44
    $region43: #{_lambda_.1} parent=5 // pred_region
      %s475 = ssub.s32 %s10, 2
      // Predicated region
      $region45: #{_lambda_.1} parent=43 // pred_check
        %p476 = pneg %p151
      $region46: #{_lambda_.1} parent=43 // pred_check_branch
        %478 = sbr.rel (%p476) target = $region48
      $region47: #{_lambda_.1} parent=43 // pred_region
        %p479 = scmp.lt.s32.totalorder %s21, 1
        %s480 = scalar_select %p479, %s21, 1
        %p481 = scmp.lt.s32.totalorder %s22, 0
        %s482 = scalar_select %p481, %s22, 0
        %s483 = smul.addr %s480, 4
        %s484 = sadd.s32 %s482, %s483
        %s485 = smul.addr %s484, 8
        %s486 = scalar_lea.vmem %s4, %s485
      $region48: #{_lambda_.1} parent=43 // pred_fallthru
        _
    $region44: #{_lambda_.1} parent=5 // pred_fallthru
      _
  $region6: #{_lambda_.1} parent=0 // loop_footer
    %s14 = sadd.s32 1, %s10
  $region7: #{_lambda_.1} parent=0 // loop_footer_branch
    %9 = sbr.rel target = $region3
  $region8: #{_lambda_.1} parent=0 // loop_exit
    _

</llo_original>
